<compile_context>
chip_gen: v7x
topology: tpu7x:2x2x1
jax: 0.10.0
libtpu: 0.0.40
codegen_flags: <defaults>
</compile_context>

<pallas_src>
import math
import numpy as np
import jax
import jax.numpy as jnp
from jax.experimental import pallas as pl
from jax.experimental.pallas import tpu as pltpu


# ----------------------------------------------------------------------------
# Parameter init (host-side, deterministic) -- matches torch __init__
# ----------------------------------------------------------------------------
def make_fourier_weight(n, inverse=False, learnable=True, key=None):
    """(2n, 2n) nn.Linear weight initialized as the (i)DFT (y = v @ w.T)."""
    eye = np.eye(n, dtype=np.complex64)
    if inverse:
        f = np.fft.ifft(np.fft.ifftshift(eye, axes=-1), axis=-2, norm="ortho")
    else:
        f = np.fft.fftshift(np.fft.fft(eye, axis=-1, norm="ortho"), axes=-2)
    re = np.real(f).astype(np.float32)
    im = np.imag(f).astype(np.float32)
    top = np.concatenate([re, -im], axis=1)
    bot = np.concatenate([im, re], axis=1)
    fft_matrix = np.concatenate([top, bot], axis=0)  # (2n, 2n)
    w = jnp.asarray(fft_matrix)
    if learnable:
        if key is None:
            key = jax.random.PRNGKey(42)
        noise = jax.random.normal(key, w.shape, dtype=jnp.float32)
        w = w + (1.0 / (math.sqrt(n) * 16.0)) * noise
    return w


def choose_pack_factor(n, H):
    """Largest power-of-two f with f*n == 128 (or a divisor thereof) that divides H."""
    if n >= 128 or n <= 0 or 128 % n != 0:
        return 1
    f = 128 // n
    while f > 1 and H % f != 0:
        f //= 2
    return f


def prepare_weight(weight, n, pack_factor=1):
    """Precompute (once per layer) the transposed, lane-packed weight.

    Returns wpk of shape (2, f*n, 2*f*n) with f = pack_factor:
      wpk[0] = [ BD_f(W.T[:n,:n]) | BD_f(W.T[:n,n:]) ]   (multiplies packed x_re)
      wpk[1] = [ BD_f(W.T[n:,:n]) | BD_f(W.T[n:,n:]) ]   (multiplies packed x_im)
    where BD_f(A) = kron(I_f, A) is the f-fold block-diagonal copy, so that
      [y_re_packed | y_im_packed] = x_re_packed @ wpk[0] + x_im_packed @ wpk[1].
    """
    f = int(pack_factor)
    assert f >= 1
    wt = jnp.transpose(weight)            # (2n, 2n); y_vec = x_vec @ wt
    w_re_rows = wt[:n, :]                 # (n, 2n): multiplies x_re
    w_im_rows = wt[n:, :]                 # (n, 2n): multiplies x_im
    if f == 1:
        return jnp.stack([w_re_rows, w_im_rows], axis=0)          # (2, n, 2n)
    eye_f = jnp.eye(f, dtype=wt.dtype)

    def blockdiag_pack(rows):             # rows = [A | B], A,B: (n, n)
        A, B = rows[:, :n], rows[:, n:]
        return jnp.concatenate([jnp.kron(eye_f, A), jnp.kron(eye_f, B)], axis=1)

    return jnp.stack([blockdiag_pack(w_re_rows), blockdiag_pack(w_im_rows)],
                     axis=0)                                        # (2, fn, 2fn)


# ----------------------------------------------------------------------------
# Hardware-aware sizing helpers
# ----------------------------------------------------------------------------
def _vmem_budget():
    """(capacity, vmem_limit_cap, data_budget) in bytes, per-generation."""
    cap = 64 * 1024 * 1024                 # conservative default (covers v7x)
    try:
        cap = int(pltpu.get_tpu_info().vmem_capacity_bytes)
    except Exception:
        pass
    if cap <= 64 * 1024 * 1024:            # v7x-class: 64 MiB VMEM per TC
        return cap, 48 * 1024 * 1024, 22 * 1024 * 1024
    return cap, 96 * 1024 * 1024, 80 * 1024 * 1024   # v5e / v6e: 128 MiB VMEM


def _num_tensorcores():
    try:
        info = pltpu.get_tpu_info()
        for attr in ("num_cores", "core_count", "num_tensorcores", "cores_per_chip"):
            v = getattr(info, attr, None)
            if isinstance(v, int) and v > 0:
                return v
    except Exception:
        pass
    return 1                               # unknown -> don't force a split


def _sublane_multiple(itemsize):
    return max(8, 32 // int(itemsize))     # 8 for f32, 16 for bf16, 32 for int8/fp8


def _choose_row_tile(n_batches, Hp, fn, itemsize, weight_resident_bytes,
                     data_budget_bytes, num_tensorcores):
    """Largest packed-row tile fitting the data budget (multiple of sublane, or == Hp)."""
    sub = _sublane_multiple(itemsize)
    row_bytes = 2 * (2 * 2 * fn * itemsize)    # in + out blocks, 2 channels, dbl-buffered
    avail = max(data_budget_bytes - weight_resident_bytes, sub * row_bytes)
    th = int(min(Hp, 1024, max(sub, avail // row_bytes)))
    if th < Hp:
        th = max(sub, (th // sub) * sub)
    # Only split to feed multiple TensorCores when they exist; on 1-TC chips the
    # grid is a sequential loop and splitting is pure per-step overhead.
    if (num_tensorcores >= 2 and n_batches * pl.cdiv(Hp, th) < 2 and Hp >= 2 * sub):
        th = (((Hp + 1) // 2) + sub - 1) // sub * sub
    return max(1, th)


# ----------------------------------------------------------------------------
# Fused Pallas kernel: complex-pack + linear + complex-unpack in one pass
# ----------------------------------------------------------------------------
def _fourier_kernel(x_ref, w_ref, o_ref):
    # x_ref / o_ref : (2, th, fn)   -- [real, imag] lane-packed rows for one tile
    # w_ref         : (2, fn, 2fn)  -- resident block-diag-packed W.T halves
    fn = o_ref.shape[-1]
    y = (jnp.dot(x_ref[0], w_ref[0], preferred_element_type=jnp.float32)
         + jnp.dot(x_ref[1], w_ref[1], preferred_element_type=jnp.float32))
    o_ref[0] = y[:, :fn].astype(o_ref.dtype)      # free slice at a 128-lane boundary
    o_ref[1] = y[:, fn:].astype(o_ref.dtype)


# ----------------------------------------------------------------------------
# Forward pass (matches LearnableFourier1D.forward exactly)
# ----------------------------------------------------------------------------
def learnable_fourier_1d(x, w_packed, n, pack_factor=1, dim=-1):
    """
    x        : array with a size-2 real/imag axis at position -3 once `dim` is
               swapped to the last axis (i.e. (..., 2, H, n) post-swap).
    w_packed : (2, f*n, 2*f*n) from prepare_weight(weight, n, pack_factor).
    Returns an array with the same shape as x.
    """
    f = int(pack_factor)
    ndim = x.ndim
    d = dim % ndim
    if d == ndim - 1:
        xt = x                                   # fast path: no transpose at all
    else:
        xt = jnp.swapaxes(x, d, -1)

    if xt.ndim < 3 or xt.shape[-3] != 2:
        raise ValueError(
            "expected a size-2 real/imag axis at position -3 after moving `dim` to "
            f"the end; got shape {xt.shape} (dim={dim}). Check that `dim` does not "
            "point at the real/imag axis itself.")
    if xt.shape[-1] != n:
        raise ValueError(f"last axis must have size n={n}, got {xt.shape[-1]}")
    H = xt.shape[-2]
    if H % f != 0:
        raise ValueError(f"pack_factor={f} must divide H={H}")
    fn = f * n
    assert w_packed.shape == (2, fn, 2 * fn), w_packed.shape

    lead = xt.shape[:-3]
    B = int(np.prod(lead)) if lead else 1
    Hp = H // f

    # Free row-major reshapes: merge leading dims + lane-pack f rows per packed row.
    x3 = xt.reshape(B * 2, Hp, fn)

    cap, vmem_cap, data_budget = _vmem_budget()
    itemsize = x3.dtype.itemsize
    w_bytes = int(np.prod(w_packed.shape)) * w_packed.dtype.itemsize
    single_buf_w = w_bytes > 4 * 1024 * 1024      # constant index_map -> 1 buffer is enough
    w_resident = w_bytes * (1 if single_buf_w else 2)
    num_tc = _num_tensorcores()

    th = _choose_row_tile(B, Hp, fn, itemsize, w_resident, data_budget, num_tc)
    grid = (B, pl.cdiv(Hp, th))

    block_bytes = 2 * th * fn * itemsize
    vmem_need = 2 * (2 * block_bytes) + w_resident
    vmem_limit = int(min(vmem_cap, max(2 * vmem_need, 32 * 1024 * 1024)))

    M = B * H
    cost = pl.CostEstimate(
        flops=2 * M * (2 * n) * (2 * n),
        transcendentals=0,
        bytes_accessed=2 * (2 * M * n * itemsize) + w_bytes,
    )

    w_spec_kwargs = dict(pipeline_mode=pl.Buffered(1)) if single_buf_w else {}
    y3 = pl.pallas_call(
        _fourier_kernel,
        out_shape=jax.ShapeDtypeStruct((B * 2, Hp, fn), x3.dtype),
        grid=grid,
        in_specs=[
            pl.BlockSpec((2, th, fn), lambda b, h: (b, h, 0)),
            pl.BlockSpec((2, fn, 2 * fn), lambda b, h: (0, 0, 0), **w_spec_kwargs),
        ],
        out_specs=pl.BlockSpec((2, th, fn), lambda b, h: (b, h, 0)),
        compiler_params=pltpu.CompilerParams(
            dimension_semantics=("parallel", "parallel"),
            vmem_limit_bytes=vmem_limit,
        ),
        cost_estimate=cost,
    )(x3, w_packed)

    out = y3.reshape(*lead, 2, H, n)
    if d == ndim - 1:
        return out
    return jnp.swapaxes(out, -1, d)


# ----------------------------------------------------------------------------
# Pure-JAX reference for correctness check
# ----------------------------------------------------------------------------
def _reference(x, weight, n, dim=-1):
    xt = jnp.swapaxes(x, dim, -1)
    x_vec = jnp.concatenate([xt[..., 0, :, :], xt[..., 1, :, :]], axis=-1)
    fft_vec = jnp.einsum("...k,nk->...n", x_vec, weight)   # y = x_vec @ W.T
    out = jnp.stack([fft_vec[..., :n], fft_vec[..., n:]], axis=-3)
    return jnp.swapaxes(out, -1, dim)


if __name__ == "__main__":
    n = 16
    B, H = 2, 16
    key = jax.random.PRNGKey(0)
    kx, kw = jax.random.split(key)

    # x: (batch=2, complex=2, H=16, n=16), float32
    x = jax.random.normal(kx, (B, 2, H, n), dtype=jnp.float32)
    weight = make_fourier_weight(n, inverse=False, learnable=True, key=kw)
    y_ref = _reference(x, weight, n, dim=-1)

    # Lane-packed fast path: f = 128 // n = 8 -> 128-lane-dense tiles.
    f = choose_pack_factor(n, H)
    w_packed = prepare_weight(weight, n, f)           # host-side, once per layer
    y = jax.block_until_ready(learnable_fourier_1d(x, w_packed, n, pack_factor=f, dim=-1))
    assert y.shape == x.shape
    np.testing.assert_allclose(np.asarray(y), np.asarray(y_ref), rtol=1e-5, atol=1e-5)

    # Unpacked fallback path (f = 1), used when n >= 128 or packing doesn't divide H.
    w_unpacked = prepare_weight(weight, n, 1)
    y1 = jax.block_until_ready(learnable_fourier_1d(x, w_unpacked, n, pack_factor=1, dim=-1))
    np.testing.assert_allclose(np.asarray(y1), np.asarray(y_ref), rtol=1e-5, atol=1e-5)

    print("KERNEL_OK")
</pallas_src>

<mosaic_0001>
module attributes {stable_mosaic.version = 11 : i64} {
  func.func @_fourier_kernel(%arg0: i32, %arg1: i32, %arg2: memref<2x2x128xf32, #tpu.memory_space<vmem>>, %arg3: memref<2x128x256xf32, #tpu.memory_space<vmem>>, %arg4: memref<2x2x128xf32, #tpu.memory_space<vmem>>) attributes {dimension_semantics = [#tpu.dimension_semantics<parallel>, #tpu.dimension_semantics<parallel>], iteration_bounds = array<i64: 2, 1>, scalar_prefetch = 0 : i64, scratch_operands = 0 : i64, tpu.core_type = #tpu.core_type<tc>, window_params = [{transform_indices = @transform_0, window_bounds = array<i64: 2, 2, 128>}, {pipeline_mode = #tpu.pipeline_mode<synchronous>, transform_indices = @transform_1, window_bounds = array<i64: 2, 128, 256>}, {transform_indices = @transform_2, window_bounds = array<i64: 2, 2, 128>}]} {
    %c0 = arith.constant 0 : index
    %c0_0 = arith.constant 0 : index
    %c0_1 = arith.constant 0 : index
    %0 = vector.load %arg2[%c0, %c0_0, %c0_1] : memref<2x2x128xf32, #tpu.memory_space<vmem>>, vector<1x2x128xf32>
    %1 = vector.shape_cast %0 : vector<1x2x128xf32> to vector<2x128xf32>
    %c0_2 = arith.constant 0 : index
    %c0_3 = arith.constant 0 : index
    %c0_4 = arith.constant 0 : index
    %2 = vector.load %arg3[%c0_2, %c0_3, %c0_4] : memref<2x128x256xf32, #tpu.memory_space<vmem>>, vector<1x128x256xf32>
    %3 = vector.shape_cast %2 : vector<1x128x256xf32> to vector<128x256xf32>
    %cst = arith.constant dense<0.000000e+00> : vector<2x256xf32>
    %4 = tpu.matmul %1, %3, %cst {dimension_numbers = #tpu.dot_dimension_numbers<[1], [0], [0], [1], [0, 0, 1, 1], [], []>} : vector<2x128xf32>, vector<128x256xf32>, vector<2x256xf32> -> vector<2x256xf32>
    %c1 = arith.constant 1 : index
    %c0_5 = arith.constant 0 : index
    %c0_6 = arith.constant 0 : index
    %5 = vector.load %arg2[%c1, %c0_5, %c0_6] : memref<2x2x128xf32, #tpu.memory_space<vmem>>, vector<1x2x128xf32>
    %6 = vector.shape_cast %5 : vector<1x2x128xf32> to vector<2x128xf32>
    %c1_7 = arith.constant 1 : index
    %c0_8 = arith.constant 0 : index
    %c0_9 = arith.constant 0 : index
    %7 = vector.load %arg3[%c1_7, %c0_8, %c0_9] : memref<2x128x256xf32, #tpu.memory_space<vmem>>, vector<1x128x256xf32>
    %8 = vector.shape_cast %7 : vector<1x128x256xf32> to vector<128x256xf32>
    %cst_10 = arith.constant dense<0.000000e+00> : vector<2x256xf32>
    %9 = tpu.matmul %6, %8, %cst_10 {dimension_numbers = #tpu.dot_dimension_numbers<[1], [0], [0], [1], [0, 0, 1, 1], [], []>} : vector<2x128xf32>, vector<128x256xf32>, vector<2x256xf32> -> vector<2x256xf32>
    %10 = arith.addf %4, %9 : vector<2x256xf32>
    %11 = vector.extract_strided_slice %10 {offsets = [0, 0], sizes = [2, 128], strides = [1, 1]} : vector<2x256xf32> to vector<2x128xf32>
    %c0_11 = arith.constant 0 : index
    %c0_12 = arith.constant 0 : index
    %c0_13 = arith.constant 0 : index
    %12 = vector.load %arg4[%c0_11, %c0_12, %c0_13] : memref<2x2x128xf32, #tpu.memory_space<vmem>>, vector<1x2x128xf32>
    %13 = vector.shape_cast %12 : vector<1x2x128xf32> to vector<2x128xf32>
    %14 = vector.shape_cast %11 : vector<2x128xf32> to vector<1x2x128xf32>
    tpu.vector_store %arg4[%c0_11, %c0_12, %c0_13], %14 {strides = array<i32>} : memref<2x2x128xf32, #tpu.memory_space<vmem>>, vector<1x2x128xf32>,
    %15 = vector.extract_strided_slice %10 {offsets = [0, 128], sizes = [2, 128], strides = [1, 1]} : vector<2x256xf32> to vector<2x128xf32>
    %c1_14 = arith.constant 1 : index
    %c0_15 = arith.constant 0 : index
    %c0_16 = arith.constant 0 : index
    %16 = vector.load %arg4[%c1_14, %c0_15, %c0_16] : memref<2x2x128xf32, #tpu.memory_space<vmem>>, vector<1x2x128xf32>
    %17 = vector.shape_cast %16 : vector<1x2x128xf32> to vector<2x128xf32>
    %18 = vector.shape_cast %15 : vector<2x128xf32> to vector<1x2x128xf32>
    tpu.vector_store %arg4[%c1_14, %c0_15, %c0_16], %18 {strides = array<i32>} : memref<2x2x128xf32, #tpu.memory_space<vmem>>, vector<1x2x128xf32>,
    return
  }
  func.func @transform_0(%arg0: i32, %arg1: i32) -> (i32, i32, i32) {
    %c0_i32 = arith.constant 0 : i32
    %c0_i32_0 = arith.constant 0 : i32
    return %arg0, %arg1, %c0_i32 : i32, i32, i32
  }
  func.func @transform_1(%arg0: i32, %arg1: i32) -> (i32, i32, i32) {
    %c0_i32 = arith.constant 0 : i32
    %c0_i32_0 = arith.constant 0 : i32
    %c0_i32_1 = arith.constant 0 : i32
    %c0_i32_2 = arith.constant 0 : i32
    return %c0_i32, %c0_i32_0, %c0_i32_1 : i32, i32, i32
  }
  func.func @transform_2(%arg0: i32, %arg1: i32) -> (i32, i32, i32) {
    %c0_i32 = arith.constant 0 : i32
    %c0_i32_0 = arith.constant 0 : i32
    return %arg0, %arg1, %c0_i32 : i32, i32, i32
  }
}

</mosaic_0001>

<llo_original>
// kernel: tpu_custom_call.1
$region0: #{tpu_custom_call.1}
  #allocation0 [shape = 'u32[]', space=smem, size = 0x4, offset = 0x4, fixed_abs, tag = 'smem constant byte address 0x4 - core index']
  #allocation1 [shape = 'u32[144,128]{1,0:T(1,128)}', space=vmem, size = 0x12000, scoped, tag = 'internal scratch']
  %s0 = inlined_call_operand.hbm [shape: f32[4,2,128], index: 0, kind: input, shape index: {}]
  %s1 = inlined_call_operand.hbm [shape: f32[2,128,256], index: 1, kind: input, shape index: {}]
  %s2 = inlined_call_operand.hbm [shape: f32[4,2,128], index: 2, kind: output, shape index: {}]
  %s3 = sld [smem:[#allocation0]]
  $region49: #{tpu_custom_call.1} parent=0
    _
  %s5 = ssub.s32 1, %s3
  %s6 = scalar_select 0, %s5, %s3
  $region1: #{tpu_custom_call.1} parent=0
    #allocation2 [shape = 'u8[4096]{0}', space=vmem, size = 0x1000, scoped, tag = 'input window, operand 0']
    #allocation3 [shape = 's32[2]{0}', space=sflag, size = 0x8, scoped, tag = 'scoped memory for tpu_custom_call.1']
    #allocation4 [shape = 's32[2]{0}', space=sflag, size = 0x8, scoped, tag = 'scoped memory for tpu_custom_call.1']
    #allocation5 [shape = 'u8[262144]{0}', space=vmem, size = 0x40000, scoped, tag = 'input window, operand 1, single buffered']
    #allocation6 [shape = 's32[1]{0}', space=sflag, size = 0x4, scoped, tag = 'scoped memory for tpu_custom_call.1']
    #allocation7 [shape = 'u8[4096]{0}', space=vmem, size = 0x1000, scoped, tag = 'output window, operand 0']
    %7 = vsyncpa [#allocation3], 0
    %s8 = scalar_lea.sflag [#allocation3], 1
    %9 = vsyncpa %s8, 0
    %10 = vsyncpa [#allocation6], 0
    %11 = vsyncpa [#allocation4], 0
    %s12 = scalar_lea.sflag [#allocation4], 1
    %13 = vsyncpa %s12, 0
    loop: start=0, step=1, limit=4
    $region2: #{tpu_custom_call.1} parent=1 // loop_pre_header
      _
    $region3: #{tpu_custom_call.1} parent=1 // loop_header
      %s15 = sphi 0, %s19
      %p16 = scmp.ge.s32.totalorder %s15, 4
      %s22 = sphi 0, %s34
      %s23 = sphi 0, %s30
      %s24 = sphi 0, %s22
      %s25 = sphi 0, %s23
      %s26 = sphi 0, %s24
      %s27 = sphi 0, %s25
      %s39 = sphi 0, %s41
      %s42 = sphi 0, %s39
      %s43 = sphi 0, %s42
      %s59 = sphi 0, %s43
      %s63 = sphi 0, %s63
      %s65 = sphi 0, %s63
      %s66 = sphi 0, %s65
      %s80 = sphi 0, %s66
      %s88 = sphi 0, %s90
      %s91 = sphi 0, %s88
      %s92 = sphi 0, %s91
      %s108 = sphi 0, %s92
    $region4: #{tpu_custom_call.1} parent=1 // loop_header_branch
      %18 = sbr.rel (%p16) target = $region8
    $region5: #{tpu_custom_call.1} parent=1 // loop_body
      %s20 = ssub.s32 %s15, 1
      %s21 = ssub.s32 %s15, 2
      %s28 = sadd.s32 1, %s23
      %p29 = scmp.ge.s32.totalorder %s28, 1
      %s30 = scalar_select %p29, 0, %s28
      %s31 = sadd.s32 1, %s22
      %s32 = scalar_select %p29, %s31, %s22
      %p33 = scmp.ge.s32.totalorder %s32, 2
      %s34 = scalar_select %p33, 0, %s32
      %s35 = ssub.s32 %s22, %s34
      %s36 = ssub.s32 %s23, %s30
      %s37 = sor.u32 %s35, %s36
      %p38 = scmp.eq.s32.totalorder %s37, 0
      %s40 = sadd.s32 %s39, 1
      %s41 = scalar_select %p38, %s39, %s40
      %p44 = pneg %p38
      %p45 = scmp.eq.s32.totalorder %s15, 1
      %p46 = por %p44, %p45
      %p47 = scmp.ne.s32.totalorder %s39, %s42
      %p48 = scmp.eq.s32.totalorder %s15, 0
      %p49 = por %p47, %p48
      %p50 = scmp.ne.s32.totalorder %s39, %s42
      %p51 = scmp.eq.s32.totalorder %s20, 1
      %p52 = por %p50, %p51
      %p53 = scmp.ne.s32.totalorder %s42, %s43
      %p54 = scmp.eq.s32.totalorder %s20, 0
      %p55 = por %p53, %p54
      %p56 = scmp.ne.s32.totalorder %s42, %s43
      %p57 = scmp.eq.s32.totalorder %s21, 1
      %p58 = por %p56, %p57
      %p60 = scmp.ne.s32.totalorder %s43, %s59
      %p61 = scmp.eq.s32.totalorder %s21, 0
      %p62 = por %p60, %p61
      %s64 = sadd.s32 %s63, 1
      %p67 = scmp.eq.s32.totalorder %s15, 1
      %p68 = scmp.ne.s32.totalorder %s63, %s65
      %p69 = scmp.eq.s32.totalorder %s15, 0
      %p70 = por %p68, %p69
      %p71 = scmp.ne.s32.totalorder %s63, %s65
      %p72 = scmp.eq.s32.totalorder %s20, 1
      %p73 = por %p71, %p72
      %p74 = scmp.ne.s32.totalorder %s65, %s66
      %p75 = scmp.eq.s32.totalorder %s20, 0
      %p76 = por %p74, %p75
      %p77 = scmp.ne.s32.totalorder %s65, %s66
      %p78 = scmp.eq.s32.totalorder %s21, 1
      %p79 = por %p77, %p78
      %p81 = scmp.ne.s32.totalorder %s66, %s80
      %p82 = scmp.eq.s32.totalorder %s21, 0
      %p83 = por %p81, %p82
      %s84 = ssub.s32 %s22, %s34
      %s85 = ssub.s32 %s23, %s30
      %s86 = sor.u32 %s84, %s85
      %p87 = scmp.eq.s32.totalorder %s86, 0
      %s89 = sadd.s32 %s88, 1
      %s90 = scalar_select %p87, %s88, %s89
      %p93 = pneg %p87
      %p94 = scmp.eq.s32.totalorder %s15, 1
      %p95 = por %p93, %p94
      %p96 = scmp.ne.s32.totalorder %s88, %s91
      %p97 = scmp.eq.s32.totalorder %s15, 0
      %p98 = por %p96, %p97
      %p99 = scmp.ne.s32.totalorder %s88, %s91
      %p100 = scmp.eq.s32.totalorder %s20, 1
      %p101 = por %p99, %p100
      %p102 = scmp.ne.s32.totalorder %s91, %s92
      %p103 = scmp.eq.s32.totalorder %s20, 0
      %p104 = por %p102, %p103
      %p105 = scmp.ne.s32.totalorder %s91, %s92
      %p106 = scmp.eq.s32.totalorder %s21, 1
      %p107 = por %p105, %p106
      %p109 = scmp.ne.s32.totalorder %s92, %s108
      %p110 = scmp.eq.s32.totalorder %s21, 0
      %p111 = por %p109, %p110
      %p112 = scmp.le.s32.totalorder 1, %s15
      %p113 = scmp.lt.s32.totalorder %s15, 3
      %p114 = pnand %p112, %p113
      %p115 = pneg %p114
      // Predicated region
      $region9: #{tpu_custom_call.1} parent=5 // pred_check
        _
      $region10: #{tpu_custom_call.1} parent=5 // pred_check_branch
        %117 = sbr.rel (%p114) target = $region12
      $region11: #{tpu_custom_call.1} parent=5 // pred_region
        %s118 = ssub.s32 %s15, 1
        // Predicated region
        $region13: #{tpu_custom_call.1} parent=11 // pred_check
          %p119 = pneg %p76
        $region14: #{tpu_custom_call.1} parent=11 // pred_check_branch
          %121 = sbr.rel (%p119) target = $region16
        $region15: #{tpu_custom_call.1} parent=11 // pred_region
          %s123 = ssub.s32 8192, 8192
          %124 = vsyncadd [#allocation6], %s123
          %s125 = sshll.u32 [#allocation5], 4
          %s126 = int_to_ptr.vmem [resolvable:$true] %s125
          %131 = dma.hbm_to_vmem [thread:$0]  %s1, 8192, %s126, [#allocation6], 256, 256, 16
        $region16: #{tpu_custom_call.1} parent=11 // pred_fallthru
          _
      $region12: #{tpu_custom_call.1} parent=5 // pred_fallthru
        _
      %p132 = scmp.lt.s32.totalorder %s15, 2
      // Predicated region
      $region17: #{tpu_custom_call.1} parent=5 // pred_check
        %p133 = pneg %p132
      $region18: #{tpu_custom_call.1} parent=5 // pred_check_branch
        %135 = sbr.rel (%p133) target = $region20
      $region19: #{tpu_custom_call.1} parent=5 // pred_region
        // Predicated region
        $region21: #{tpu_custom_call.1} parent=19 // pred_check
          %p136 = pneg %p49
        $region22: #{tpu_custom_call.1} parent=19 // pred_check_branch
          %138 = sbr.rel (%p136) target = $region24
        $region23: #{tpu_custom_call.1} parent=19 // pred_region
          %s139 = sand.u32 %s39, 1
          %s140 = scalar_lea.sflag [#allocation3], %s139
          %s141 = sand.u32 %s39, 1
          %s142 = smul.addr %s141, 4
          %s143 = scalar_lea.vmem [#allocation2], %s142
          %s144 = smul.u32 2, %s22
          %s146 = ssub.s32 64, 64
          %147 = vsyncadd %s140, %s146
          %s148 = sadd.s32 %s23, %s144
          %s149 = smul.addr %s148, 32
          %s150 = scalar_lea.hbm %s0, %s149
          %s151 = sshll.u32 %s143, 4
          %s152 = int_to_ptr.vmem [resolvable:$true] %s151
          %157 = dma.hbm_to_vmem [thread:$0]  %s150, 64, %s152, %s140, 32, 32, 2
        $region24: #{tpu_custom_call.1} parent=19 // pred_fallthru
          _
      $region20: #{tpu_custom_call.1} parent=5 // pred_fallthru
        _
      %p158 = scmp.le.s32.totalorder 1, %s15
      %p159 = scmp.lt.s32.totalorder %s15, 3
      %p160 = pnand %p158, %p159
      %p161 = pneg %p160
      // Predicated region
      $region25: #{tpu_custom_call.1} parent=5 // pred_check
        _
      $region26: #{tpu_custom_call.1} parent=5 // pred_check_branch
        %163 = sbr.rel (%p160) target = $region28
      $region27: #{tpu_custom_call.1} parent=5 // pred_region
        %s164 = ssub.s32 %s15, 1
        %s165 = sand.u32 %s42, 1
        %s166 = scalar_lea.sflag [#allocation3], %s165
        %s167 = sand.u32 %s42, 1
        %s168 = smul.addr %s167, 4
        %s169 = scalar_lea.vmem [#allocation2], %s168
        // Predicated region
        $region29: #{tpu_custom_call.1} parent=27 // pred_check
          %p170 = pneg %p55
        $region30: #{tpu_custom_call.1} parent=27 // pred_check_branch
          %172 = sbr.rel (%p170) target = $region32
        $region31: #{tpu_custom_call.1} parent=27 // pred_region
          %173 = dma.done %s166, 64
        $region32: #{tpu_custom_call.1} parent=27 // pred_fallthru
          _
        // Predicated region
        $region33: #{tpu_custom_call.1} parent=27 // pred_check
          %p174 = pneg %p76
        $region34: #{tpu_custom_call.1} parent=27 // pred_check_branch
          %176 = sbr.rel (%p174) target = $region36
        $region35: #{tpu_custom_call.1} parent=27 // pred_region
          %177 = dma.done [#allocation6], 8192
        $region36: #{tpu_custom_call.1} parent=27 // pred_fallthru
          _
        %s178 = sand.u32 %s42, 1
        %s179 = scalar_lea.sflag [#allocation3], %s178
        %s180 = sand.u32 %s42, 1
        %s181 = smul.addr %s180, 4
        %s182 = scalar_lea.vmem [#allocation2], %s181
        %p183 = pneg %p55
        %p184 = pneg %p52
        %p185 = pneg %p76
        %p186 = pneg %p73
        %p187 = pneg %p104
        %p188 = pneg %p101
        %s189 = sand.u32 %s91, 1
        %s190 = scalar_lea.sflag [#allocation4], %s189
        %s191 = sand.u32 %s91, 1
        %s192 = smul.addr %s191, 4
        %s193 = scalar_lea.vmem [#allocation7], %s192
        %s194 = smul.u32 2, %s24
        %s195 = smul.u32 2, %s24
        %v196 = vld [vmem:[%s169] sm:$0x3]
        %v197 = vld [vmem:[#allocation5] sm:$0xff]
        %v198 = vld [vmem:[#allocation5 + $0x8] sm:$0xff]
        %v199 = vld [vmem:[#allocation5 + $0x10] sm:$0xff]
        %v200 = vld [vmem:[#allocation5 + $0x18] sm:$0xff]
        %v201 = vld [vmem:[#allocation5 + $0x20] sm:$0xff]
        %v202 = vld [vmem:[#allocation5 + $0x28] sm:$0xff]
        %v203 = vld [vmem:[#allocation5 + $0x30] sm:$0xff]
        %v204 = vld [vmem:[#allocation5 + $0x38] sm:$0xff]
        %v205 = vld [vmem:[#allocation5 + $0x40] sm:$0xff]
        %v206 = vld [vmem:[#allocation5 + $0x48] sm:$0xff]
        %v207 = vld [vmem:[#allocation5 + $0x50] sm:$0xff]
        %v208 = vld [vmem:[#allocation5 + $0x58] sm:$0xff]
        %v209 = vld [vmem:[#allocation5 + $0x60] sm:$0xff]
        %v210 = vld [vmem:[#allocation5 + $0x68] sm:$0xff]
        %v211 = vld [vmem:[#allocation5 + $0x70] sm:$0xff]
        %v212 = vld [vmem:[#allocation5 + $0x78] sm:$0xff]
        %v213 = vld [vmem:[#allocation5 + $0x80] sm:$0xff]
        %v214 = vld [vmem:[#allocation5 + $0x88] sm:$0xff]
        %v215 = vld [vmem:[#allocation5 + $0x90] sm:$0xff]
        %v216 = vld [vmem:[#allocation5 + $0x98] sm:$0xff]
        %v217 = vld [vmem:[#allocation5 + $0xa0] sm:$0xff]
        %v218 = vld [vmem:[#allocation5 + $0xa8] sm:$0xff]
        %v219 = vld [vmem:[#allocation5 + $0xb0] sm:$0xff]
        %v220 = vld [vmem:[#allocation5 + $0xb8] sm:$0xff]
        %v221 = vld [vmem:[#allocation5 + $0xc0] sm:$0xff]
        %v222 = vld [vmem:[#allocation5 + $0xc8] sm:$0xff]
        %v223 = vld [vmem:[#allocation5 + $0xd0] sm:$0xff]
        %v224 = vld [vmem:[#allocation5 + $0xd8] sm:$0xff]
        %v225 = vld [vmem:[#allocation5 + $0xe0] sm:$0xff]
        %v226 = vld [vmem:[#allocation5 + $0xe8] sm:$0xff]
        %v227 = vld [vmem:[#allocation5 + $0xf0] sm:$0xff]
        %v228 = vld [vmem:[#allocation5 + $0xf8] sm:$0xff]
        %s229 = scalar_lea.vmem %s169, 2 [#allocation2]
        %v230 = vld [vmem:[%s229] sm:$0x3]
        %s231 = scalar_lea.vmem [#allocation5], 256
        %v232 = vld [vmem:[%s231] sm:$0xff]
        %v233 = vld [vmem:[%s231 + $0x8] sm:$0xff]
        %v234 = vld [vmem:[%s231 + $0x10] sm:$0xff]
        %v235 = vld [vmem:[%s231 + $0x18] sm:$0xff]
        %v236 = vld [vmem:[%s231 + $0x20] sm:$0xff]
        %v237 = vld [vmem:[%s231 + $0x28] sm:$0xff]
        %v238 = vld [vmem:[%s231 + $0x30] sm:$0xff]
        %v239 = vld [vmem:[%s231 + $0x38] sm:$0xff]
        %v240 = vld [vmem:[%s231 + $0x40] sm:$0xff]
        %v241 = vld [vmem:[%s231 + $0x48] sm:$0xff]
        %v242 = vld [vmem:[%s231 + $0x50] sm:$0xff]
        %v243 = vld [vmem:[%s231 + $0x58] sm:$0xff]
        %v244 = vld [vmem:[%s231 + $0x60] sm:$0xff]
        %v245 = vld [vmem:[%s231 + $0x68] sm:$0xff]
        %v246 = vld [vmem:[%s231 + $0x70] sm:$0xff]
        %v247 = vld [vmem:[%s231 + $0x78] sm:$0xff]
        %v248 = vld [vmem:[%s231 + $0x80] sm:$0xff]
        %v249 = vld [vmem:[%s231 + $0x88] sm:$0xff]
        %v250 = vld [vmem:[%s231 + $0x90] sm:$0xff]
        %v251 = vld [vmem:[%s231 + $0x98] sm:$0xff]
        %v252 = vld [vmem:[%s231 + $0xa0] sm:$0xff]
        %v253 = vld [vmem:[%s231 + $0xa8] sm:$0xff]
        %v254 = vld [vmem:[%s231 + $0xb0] sm:$0xff]
        %v255 = vld [vmem:[%s231 + $0xb8] sm:$0xff]
        %v256 = vld [vmem:[%s231 + $0xc0] sm:$0xff]
        %v257 = vld [vmem:[%s231 + $0xc8] sm:$0xff]
        %v258 = vld [vmem:[%s231 + $0xd0] sm:$0xff]
        %v259 = vld [vmem:[%s231 + $0xd8] sm:$0xff]
        %v260 = vld [vmem:[%s231 + $0xe0] sm:$0xff]
        %v261 = vld [vmem:[%s231 + $0xe8] sm:$0xff]
        %v262 = vld [vmem:[%s231 + $0xf0] sm:$0xff]
        %v263 = vld [vmem:[%s231 + $0xf8] sm:$0xff]
        %264 = vmatprep.subr.mxu0 %v233
        %265 = vmatpush1.msra.mxu0 %v232
        %266 = vmatprep.subr.mxu0 %v235
        %267 = vmatpush1.msra.mxu0 %v234
        %268 = vmatprep.subr.mxu0 %v237
        %269 = vmatpush1.msra.mxu0 %v236
        %270 = vmatprep.subr.mxu0 %v239
        %271 = vmatpush1.msra.mxu0 %v238
        %272 = vmatprep.subr.mxu0 %v241
        %273 = vmatpush1.msra.mxu0 %v240
        %274 = vmatprep.subr.mxu0 %v243
        %275 = vmatpush1.msra.mxu0 %v242
        %276 = vmatprep.subr.mxu0 %v245
        %277 = vmatpush1.msra.mxu0 %v244
        %278 = vmatprep.subr.mxu0 %v247
        %279 = vmatpush1.msra.mxu0 %v246
        %280 = vmatprep.subr.mxu0 %v249
        %281 = vmatpush1.msra.mxu0 %v248
        %282 = vmatprep.subr.mxu0 %v251
        %283 = vmatpush1.msra.mxu0 %v250
        %284 = vmatprep.subr.mxu0 %v253
        %285 = vmatpush1.msra.mxu0 %v252
        %286 = vmatprep.subr.mxu0 %v255
        %287 = vmatpush1.msra.mxu0 %v254
        %288 = vmatprep.subr.mxu0 %v257
        %289 = vmatpush1.msra.mxu0 %v256
        %290 = vmatprep.subr.mxu0 %v259
        %291 = vmatpush1.msra.mxu0 %v258
        %292 = vmatprep.subr.mxu0 %v261
        %293 = vmatpush1.msra.mxu0 %v260
        %294 = vmatprep.subr.mxu0 %v263
        %295 = vmatpush1.msra.mxu0 %v262
        %296 = vmatprep.subr.mxu0 0.0
        %297 = vmatpush1.msra.mxu0 0.0
        %298 = vmatprep.subr.mxu0 0.0
        %299 = vmatpush1.msra.mxu0 0.0
        %300 = vmatprep.subr.mxu0 0.0
        %301 = vmatpush1.msra.mxu0 0.0
        %302 = vmatprep.subr.mxu0 0.0
        %303 = vmatpush1.msra.mxu0 0.0
        %304 = vmatprep.subr.mxu0 0.0
        %305 = vmatpush1.msra.mxu0 0.0
        %306 = vmatprep.subr.mxu0 0.0
        %307 = vmatpush1.msra.mxu0 0.0
        %308 = vmatprep.subr.mxu0 0.0
        %309 = vmatpush1.msra.mxu0 0.0
        %310 = vmatprep.subr.mxu0 0.0
        %311 = vmatpush1.msra.mxu0 0.0
        %312 = vmatprep.subr.mxu0 0.0
        %313 = vmatpush1.msra.mxu0 0.0
        %314 = vmatprep.subr.mxu0 0.0
        %315 = vmatpush1.msra.mxu0 0.0
        %316 = vmatprep.subr.mxu0 0.0
        %317 = vmatpush1.msra.mxu0 0.0
        %318 = vmatprep.subr.mxu0 0.0
        %319 = vmatpush1.msra.mxu0 0.0
        %320 = vmatprep.subr.mxu0 0.0
        %321 = vmatpush1.msra.mxu0 0.0
        %322 = vmatprep.subr.mxu0 0.0
        %323 = vmatpush1.msra.mxu0 0.0
        %324 = vmatprep.subr.mxu0 0.0
        %325 = vmatpush1.msra.mxu0 0.0
        %326 = vmatprep.subr.mxu0 0.0
        %327 = vmatpush1.msra.mxu0 0.0
        %328 = vmatprep.mubr.f32.mxu0 0.0
        %329 = vmatmul.mubr.f32.gmra.mrb[0].mxu0 %v230
        %v330 = vpop.f32.mrb[0].mxu0
        %v331 = vadd.f32 0.0, %v330
        %v332 = vpop.f32.mrb[0].mxu0
        %v333 = vadd.f32 0.0, %v332
        %334 = vdwg.mxu0
        %335 = vmatprep.subr.mxu0 %v198
        %336 = vmatpush1.msra.mxu0 %v197
        %337 = vmatprep.subr.mxu0 %v200
        %338 = vmatpush1.msra.mxu0 %v199
        %339 = vmatprep.subr.mxu0 %v202
        %340 = vmatpush1.msra.mxu0 %v201
        %341 = vmatprep.subr.mxu0 %v204
        %342 = vmatpush1.msra.mxu0 %v203
        %343 = vmatprep.subr.mxu0 %v206
        %344 = vmatpush1.msra.mxu0 %v205
        %345 = vmatprep.subr.mxu0 %v208
        %346 = vmatpush1.msra.mxu0 %v207
        %347 = vmatprep.subr.mxu0 %v210
        %348 = vmatpush1.msra.mxu0 %v209
        %349 = vmatprep.subr.mxu0 %v212
        %350 = vmatpush1.msra.mxu0 %v211
        %351 = vmatprep.subr.mxu0 %v214
        %352 = vmatpush1.msra.mxu0 %v213
        %353 = vmatprep.subr.mxu0 %v216
        %354 = vmatpush1.msra.mxu0 %v215
        %355 = vmatprep.subr.mxu0 %v218
        %356 = vmatpush1.msra.mxu0 %v217
        %357 = vmatprep.subr.mxu0 %v220
        %358 = vmatpush1.msra.mxu0 %v219
        %359 = vmatprep.subr.mxu0 %v222
        %360 = vmatpush1.msra.mxu0 %v221
        %361 = vmatprep.subr.mxu0 %v224
        %362 = vmatpush1.msra.mxu0 %v223
        %363 = vmatprep.subr.mxu0 %v226
        %364 = vmatpush1.msra.mxu0 %v225
        %365 = vmatprep.subr.mxu0 %v228
        %366 = vmatpush1.msra.mxu0 %v227
        %367 = vmatprep.subr.mxu0 0.0
        %368 = vmatpush1.msra.mxu0 0.0
        %369 = vmatprep.subr.mxu0 0.0
        %370 = vmatpush1.msra.mxu0 0.0
        %371 = vmatprep.subr.mxu0 0.0
        %372 = vmatpush1.msra.mxu0 0.0
        %373 = vmatprep.subr.mxu0 0.0
        %374 = vmatpush1.msra.mxu0 0.0
        %375 = vmatprep.subr.mxu0 0.0
        %376 = vmatpush1.msra.mxu0 0.0
        %377 = vmatprep.subr.mxu0 0.0
        %378 = vmatpush1.msra.mxu0 0.0
        %379 = vmatprep.subr.mxu0 0.0
        %380 = vmatpush1.msra.mxu0 0.0
        %381 = vmatprep.subr.mxu0 0.0
        %382 = vmatpush1.msra.mxu0 0.0
        %383 = vmatprep.subr.mxu0 0.0
        %384 = vmatpush1.msra.mxu0 0.0
        %385 = vmatprep.subr.mxu0 0.0
        %386 = vmatpush1.msra.mxu0 0.0
        %387 = vmatprep.subr.mxu0 0.0
        %388 = vmatpush1.msra.mxu0 0.0
        %389 = vmatprep.subr.mxu0 0.0
        %390 = vmatpush1.msra.mxu0 0.0
        %391 = vmatprep.subr.mxu0 0.0
        %392 = vmatpush1.msra.mxu0 0.0
        %393 = vmatprep.subr.mxu0 0.0
        %394 = vmatpush1.msra.mxu0 0.0
        %395 = vmatprep.subr.mxu0 0.0
        %396 = vmatpush1.msra.mxu0 0.0
        %397 = vmatprep.subr.mxu0 0.0
        %398 = vmatpush1.msra.mxu0 0.0
        %399 = vmatprep.mubr.f32.mxu0 0.0
        %400 = vmatmul.mubr.f32.gmra.mrb[0].mxu0 %v196
        %v401 = vpop.f32.mrb[0].mxu0
        %v402 = vadd.f32 %v331, %v401
        %v403 = vpop.f32.mrb[0].mxu0
        %v404 = vadd.f32 %v333, %v403
        %405 = vdwg.mxu0
        %406 = vst [vmem:[%s193] sm:$0x3] %v402
        %s407 = scalar_lea.vmem %s193, 2 [#allocation7]
        %408 = vst [vmem:[%s407] sm:$0x3] %v404
        %s409 = sand.u32 %s91, 1
        %s410 = scalar_lea.sflag [#allocation4], %s409
        %s411 = sand.u32 %s91, 1
        %s412 = smul.addr %s411, 4
        %s413 = scalar_lea.vmem [#allocation7], %s412
        // Predicated region
        $region37: #{tpu_custom_call.1} parent=27 // pred_check
          %p414 = pneg %p101
        $region38: #{tpu_custom_call.1} parent=27 // pred_check_branch
          %416 = sbr.rel (%p414) target = $region40
        $region39: #{tpu_custom_call.1} parent=27 // pred_region
          %s417 = smul.u32 2, %s24
          %s419 = ssub.s32 64, 64
          %420 = vsyncadd %s410, %s419
          %s421 = sadd.s32 %s25, %s417
          %s422 = smul.addr %s421, 32
          %s423 = scalar_lea.hbm %s2, %s422
          %s424 = sshll.u32 %s413, 4
          %s425 = int_to_ptr.vmem [resolvable:$true] %s424
          %430 = dma.vmem_to_hbm [thread:$0]  %s425, 64, %s423, %s410, 32, 32, 2
        $region40: #{tpu_custom_call.1} parent=27 // pred_fallthru
          _
      $region28: #{tpu_custom_call.1} parent=5 // pred_fallthru
        _
      %p431 = scmp.le.s32.totalorder 2, %s15
      // Predicated region
      $region41: #{tpu_custom_call.1} parent=5 // pred_check
        %p432 = pneg %p431
      $region42: #{tpu_custom_call.1} parent=5 // pred_check_branch
        %434 = sbr.rel (%p432) target = $region44
      $region43: #{tpu_custom_call.1} parent=5 // pred_region
        %s435 = ssub.s32 %s15, 2
        // Predicated region
        $region45: #{tpu_custom_call.1} parent=43 // pred_check
          %p436 = pneg %p107
        $region46: #{tpu_custom_call.1} parent=43 // pred_check_branch
          %438 = sbr.rel (%p436) target = $region48
        $region47: #{tpu_custom_call.1} parent=43 // pred_region
          %s439 = sand.u32 %s92, 1
          %s440 = scalar_lea.sflag [#allocation4], %s439
          %s441 = sand.u32 %s92, 1
          %s442 = smul.addr %s441, 4
          %s443 = scalar_lea.vmem [#allocation7], %s442
          %444 = dma.done %s440, 64
        $region48: #{tpu_custom_call.1} parent=43 // pred_fallthru
          _
      $region44: #{tpu_custom_call.1} parent=5 // pred_fallthru
        _
    $region6: #{tpu_custom_call.1} parent=1 // loop_footer
      %s19 = sadd.s32 1, %s15
    $region7: #{tpu_custom_call.1} parent=1 // loop_footer_branch
      %14 = sbr.rel target = $region3
    $region8: #{tpu_custom_call.1} parent=1 // loop_exit
      _
    %445 = vsyncpa [#allocation3], 1
    %s446 = scalar_lea.sflag [#allocation3], 1
    %447 = vsyncpa %s446, 1
    %448 = vsyncpa [#allocation6], 1
    %449 = vsyncpa [#allocation4], 1
    %s450 = scalar_lea.sflag [#allocation4], 1
    %451 = vsyncpa %s450, 1

</llo_original>
